<compile_context>
chip_gen: v7x
topology: tpu7x:2x2x1
jax: 0.10.0
libtpu: 0.0.40
codegen_flags: <defaults>
</compile_context>

<pallas_src>
import jax
import jax.numpy as jnp
from jax.experimental import pallas as pl
from jax.experimental.pallas import tpu as pltpu


def autoencoder_kernel(
    x_ref,
    w0_ref, b0_ref,
    w1_ref, b1_ref,
    w2_ref, b2_ref,
    w3_ref, b3_ref,
    w4_ref, b4_ref,
    w5_ref, b5_ref,
    o_ref,
):
    """Fused forward pass: 6x (Linear -> ReLU) on one batch tile."""
    layers = (
        (w0_ref, b0_ref),
        (w1_ref, b1_ref),
        (w2_ref, b2_ref),
        (w3_ref, b3_ref),
        (w4_ref, b4_ref),
        (w5_ref, b5_ref),
    )
    h_bf16 = x_ref[...]                      # (tb, D) already bf16
    out_f32 = None
    n = len(layers)
    for idx, (w_ref, b_ref) in enumerate(layers):
        # bf16 MXU inputs, fp32 accumulation.
        acc = jnp.dot(h_bf16, w_ref[...], preferred_element_type=jnp.float32)
        act = jnp.maximum(acc + b_ref[...], 0.0)   # bias [1,out] broadcasts; fp32 ReLU
        if idx + 1 < n:
            h_bf16 = act.astype(jnp.bfloat16)      # cast only feeds the next MXU op
        else:
            out_f32 = act                          # keep final layer in fp32
    o_ref[...] = out_f32.astype(o_ref.dtype)


def _round_up(x, m):
    return ((x + m - 1) // m) * m


def autoencoder_forward(x, params, tb=256):
    """x: [B, input_dim] float32.
    params: list of 6 (W, b) pairs, W: [in, out] fp32, b: [1, out] fp32.
    Returns decoded output [B, input_dim] float32."""
    B, D = x.shape

    # Batch tile: 256 saturates the MXU M-dim; clamp (to a multiple of 16 for
    # bf16 sublane packing) when the actual batch is small.
    tb = max(16, min(tb, _round_up(B, 16)))
    B_pad = _round_up(B, tb)

    # Activations enter the kernel in bf16 (matmul inputs are bf16 anyway).
    x_bf = x.astype(jnp.bfloat16)
    if B_pad != B:
        x_bf = jnp.pad(x_bf, ((0, B_pad - B), (0, 0)))

    # Weights to bf16 once on the host side; biases stay fp32.
    flat = []
    for w, b in params:
        flat.append(w.astype(jnp.bfloat16))
        flat.append(b.astype(jnp.float32))

    grid = (B_pad // tb,)

    in_specs = [pl.BlockSpec((tb, D), lambda i: (i, 0))]
    for arr in flat:
        # Constant index_map: weight/bias blocks are resident across the grid.
        in_specs.append(pl.BlockSpec(arr.shape, lambda i: (0, 0)))
    out_spec = pl.BlockSpec((tb, D), lambda i: (i, 0))

    # Advisory cost estimate for XLA's scheduler.
    layer_dims = [(w.shape[0], w.shape[1]) for w, _ in params]
    flops = 2 * B_pad * sum(fi * fo for fi, fo in layer_dims)
    bytes_accessed = (
        x_bf.size * x_bf.dtype.itemsize          # bf16 input
        + B_pad * D * 4                          # fp32 output
        + sum(a.size * a.dtype.itemsize for a in flat)
    )
    cost = pl.CostEstimate(flops=flops, transcendentals=0,
                           bytes_accessed=bytes_accessed)

    # VMEM budget: double-buffered in (bf16) / out (fp32) tiles + resident weights.
    act_bytes = 2 * tb * D * 2 + 2 * tb * D * 4
    wgt_bytes = sum(a.size * a.dtype.itemsize for a in flat)
    vmem_limit = int(min(max(2 * (act_bytes + wgt_bytes) + (4 << 20), 32 << 20),
                         64 << 20))

    out = pl.pallas_call(
        autoencoder_kernel,
        out_shape=jax.ShapeDtypeStruct((B_pad, D), jnp.float32),
        grid=grid,
        in_specs=in_specs,
        out_specs=out_spec,
        compiler_params=pltpu.CompilerParams(
            dimension_semantics=("parallel",),
            vmem_limit_bytes=vmem_limit,
        ),
        cost_estimate=cost,
    )(x_bf, *flat)

    return out[:B] if B_pad != B else out


def init_params(key, input_dim, hidden_dims):
    """Deterministic init matching the PyTorch module's layer shapes.
    Layer order: enc(in->h0->h1->h2), dec(h2->h1->h0->in)."""
    dims = [
        (input_dim, hidden_dims[0]),
        (hidden_dims[0], hidden_dims[1]),
        (hidden_dims[1], hidden_dims[2]),
        (hidden_dims[2], hidden_dims[1]),
        (hidden_dims[1], hidden_dims[0]),
        (hidden_dims[0], input_dim),
    ]
    params = []
    for (fan_in, fan_out) in dims:
        key, kw, kb = jax.random.split(key, 3)
        bound = 1.0 / jnp.sqrt(jnp.float32(fan_in))  # nn.Linear default range
        w = jax.random.uniform(kw, (fan_in, fan_out), jnp.float32, -bound, bound)
        b = jax.random.uniform(kb, (1, fan_out), jnp.float32, -bound, bound)
        params.append((w, b))
    return params


def reference_forward(x, params):
    """Pure-JAX reference with the same bf16-matmul / fp32-accumulate numerics."""
    h = x
    for w, b in params:
        acc = jnp.dot(h.astype(jnp.bfloat16), w.astype(jnp.bfloat16),
                      preferred_element_type=jnp.float32)
        h = jnp.maximum(acc + b, 0.0)
    return h


if __name__ == "__main__":
    key = jax.random.PRNGKey(0)
    input_dim = 256
    hidden_dims = (128, 64, 32)
    batch = 8

    kx, kp = jax.random.split(key)
    x = jax.random.normal(kx, (batch, input_dim), jnp.float32)
    params = init_params(kp, input_dim, hidden_dims)

    out = autoencoder_forward(x, params)
    out = jax.block_until_ready(out)

    ref = reference_forward(x, params)
    assert out.shape == (batch, input_dim)
    assert jnp.allclose(out, ref, atol=1e-2, rtol=1e-2), "mismatch vs reference"

    print("KERNEL_OK")
</pallas_src>

<mosaic_0001>
module attributes {stable_mosaic.version = 11 : i64} {
  func.func @autoencoder_kernel(%arg0: i32, %arg1: memref<16x256xbf16, #tpu.memory_space<vmem>>, %arg2: memref<256x128xbf16, #tpu.memory_space<vmem>>, %arg3: memref<1x128xf32, #tpu.memory_space<vmem>>, %arg4: memref<128x64xbf16, #tpu.memory_space<vmem>>, %arg5: memref<1x64xf32, #tpu.memory_space<vmem>>, %arg6: memref<64x32xbf16, #tpu.memory_space<vmem>>, %arg7: memref<1x32xf32, #tpu.memory_space<vmem>>, %arg8: memref<32x64xbf16, #tpu.memory_space<vmem>>, %arg9: memref<1x64xf32, #tpu.memory_space<vmem>>, %arg10: memref<64x128xbf16, #tpu.memory_space<vmem>>, %arg11: memref<1x128xf32, #tpu.memory_space<vmem>>, %arg12: memref<128x256xbf16, #tpu.memory_space<vmem>>, %arg13: memref<1x256xf32, #tpu.memory_space<vmem>>, %arg14: memref<16x256xf32, #tpu.memory_space<vmem>>) attributes {dimension_semantics = [#tpu.dimension_semantics<parallel>], iteration_bounds = array<i64: 1>, scalar_prefetch = 0 : i64, scratch_operands = 0 : i64, tpu.core_type = #tpu.core_type<tc>, window_params = [{transform_indices = @transform_0, window_bounds = array<i64: 16, 256>}, {pipeline_mode = #tpu.pipeline_mode<synchronous>, transform_indices = @transform_1, window_bounds = array<i64: 256, 128>}, {pipeline_mode = #tpu.pipeline_mode<synchronous>, transform_indices = @transform_2, window_bounds = array<i64: 1, 128>}, {pipeline_mode = #tpu.pipeline_mode<synchronous>, transform_indices = @transform_3, window_bounds = array<i64: 128, 64>}, {pipeline_mode = #tpu.pipeline_mode<synchronous>, transform_indices = @transform_4, window_bounds = array<i64: 1, 64>}, {pipeline_mode = #tpu.pipeline_mode<synchronous>, transform_indices = @transform_5, window_bounds = array<i64: 64, 32>}, {pipeline_mode = #tpu.pipeline_mode<synchronous>, transform_indices = @transform_6, window_bounds = array<i64: 1, 32>}, {pipeline_mode = #tpu.pipeline_mode<synchronous>, transform_indices = @transform_7, window_bounds = array<i64: 32, 64>}, {pipeline_mode = #tpu.pipeline_mode<synchronous>, transform_indices = @transform_8, window_bounds = array<i64: 1, 64>}, {pipeline_mode = #tpu.pipeline_mode<synchronous>, transform_indices = @transform_9, window_bounds = array<i64: 64, 128>}, {pipeline_mode = #tpu.pipeline_mode<synchronous>, transform_indices = @transform_10, window_bounds = array<i64: 1, 128>}, {pipeline_mode = #tpu.pipeline_mode<synchronous>, transform_indices = @transform_11, window_bounds = array<i64: 128, 256>}, {pipeline_mode = #tpu.pipeline_mode<synchronous>, transform_indices = @transform_12, window_bounds = array<i64: 1, 256>}, {transform_indices = @transform_13, window_bounds = array<i64: 16, 256>}]} {
    %c0 = arith.constant 0 : index
    %c0_0 = arith.constant 0 : index
    %0 = vector.load %arg1[%c0, %c0_0] : memref<16x256xbf16, #tpu.memory_space<vmem>>, vector<16x256xbf16>
    %c0_1 = arith.constant 0 : index
    %c0_2 = arith.constant 0 : index
    %1 = vector.load %arg2[%c0_1, %c0_2] : memref<256x128xbf16, #tpu.memory_space<vmem>>, vector<256x128xbf16>
    %cst = arith.constant dense<0.000000e+00> : vector<16x128xf32>
    %2 = tpu.matmul %0, %1, %cst {dimension_numbers = #tpu.dot_dimension_numbers<[1], [0], [0], [1], [0, 0, 1, 1], [], []>} : vector<16x256xbf16>, vector<256x128xbf16>, vector<16x128xf32> -> vector<16x128xf32>
    %c0_3 = arith.constant 0 : index
    %c0_4 = arith.constant 0 : index
    %3 = vector.load %arg3[%c0_3, %c0_4] : memref<1x128xf32, #tpu.memory_space<vmem>>, vector<1x128xf32>
    %4 = vector.broadcast %3 : vector<1x128xf32> to vector<16x128xf32>
    %5 = arith.addf %2, %4 : vector<16x128xf32>
    %cst_5 = arith.constant 0.000000e+00 : f32
    %6 = vector.broadcast %cst_5 : f32 to vector<16x128xf32>
    %7 = arith.maximumf %5, %6 : vector<16x128xf32>
    %8 = arith.truncf %7 : vector<16x128xf32> to vector<16x128xbf16>
    %c0_6 = arith.constant 0 : index
    %c0_7 = arith.constant 0 : index
    %9 = vector.load %arg4[%c0_6, %c0_7] : memref<128x64xbf16, #tpu.memory_space<vmem>>, vector<128x64xbf16>
    %cst_8 = arith.constant dense<0.000000e+00> : vector<16x64xf32>
    %10 = tpu.matmul %8, %9, %cst_8 {dimension_numbers = #tpu.dot_dimension_numbers<[1], [0], [0], [1], [0, 0, 1, 1], [], []>} : vector<16x128xbf16>, vector<128x64xbf16>, vector<16x64xf32> -> vector<16x64xf32>
    %c0_9 = arith.constant 0 : index
    %c0_10 = arith.constant 0 : index
    %11 = vector.load %arg5[%c0_9, %c0_10] : memref<1x64xf32, #tpu.memory_space<vmem>>, vector<1x64xf32>
    %12 = vector.broadcast %11 : vector<1x64xf32> to vector<16x64xf32>
    %13 = arith.addf %10, %12 : vector<16x64xf32>
    %cst_11 = arith.constant 0.000000e+00 : f32
    %14 = vector.broadcast %cst_11 : f32 to vector<16x64xf32>
    %15 = arith.maximumf %13, %14 : vector<16x64xf32>
    %16 = arith.truncf %15 : vector<16x64xf32> to vector<16x64xbf16>
    %c0_12 = arith.constant 0 : index
    %c0_13 = arith.constant 0 : index
    %17 = vector.load %arg6[%c0_12, %c0_13] : memref<64x32xbf16, #tpu.memory_space<vmem>>, vector<64x32xbf16>
    %cst_14 = arith.constant dense<0.000000e+00> : vector<16x32xf32>
    %18 = tpu.matmul %16, %17, %cst_14 {dimension_numbers = #tpu.dot_dimension_numbers<[1], [0], [0], [1], [0, 0, 1, 1], [], []>} : vector<16x64xbf16>, vector<64x32xbf16>, vector<16x32xf32> -> vector<16x32xf32>
    %c0_15 = arith.constant 0 : index
    %c0_16 = arith.constant 0 : index
    %19 = vector.load %arg7[%c0_15, %c0_16] : memref<1x32xf32, #tpu.memory_space<vmem>>, vector<1x32xf32>
    %20 = vector.broadcast %19 : vector<1x32xf32> to vector<16x32xf32>
    %21 = arith.addf %18, %20 : vector<16x32xf32>
    %cst_17 = arith.constant 0.000000e+00 : f32
    %22 = vector.broadcast %cst_17 : f32 to vector<16x32xf32>
    %23 = arith.maximumf %21, %22 : vector<16x32xf32>
    %24 = arith.truncf %23 : vector<16x32xf32> to vector<16x32xbf16>
    %c0_18 = arith.constant 0 : index
    %c0_19 = arith.constant 0 : index
    %25 = vector.load %arg8[%c0_18, %c0_19] : memref<32x64xbf16, #tpu.memory_space<vmem>>, vector<32x64xbf16>
    %cst_20 = arith.constant dense<0.000000e+00> : vector<16x64xf32>
    %26 = tpu.matmul %24, %25, %cst_20 {dimension_numbers = #tpu.dot_dimension_numbers<[1], [0], [0], [1], [0, 0, 1, 1], [], []>} : vector<16x32xbf16>, vector<32x64xbf16>, vector<16x64xf32> -> vector<16x64xf32>
    %c0_21 = arith.constant 0 : index
    %c0_22 = arith.constant 0 : index
    %27 = vector.load %arg9[%c0_21, %c0_22] : memref<1x64xf32, #tpu.memory_space<vmem>>, vector<1x64xf32>
    %28 = vector.broadcast %27 : vector<1x64xf32> to vector<16x64xf32>
    %29 = arith.addf %26, %28 : vector<16x64xf32>
    %cst_23 = arith.constant 0.000000e+00 : f32
    %30 = vector.broadcast %cst_23 : f32 to vector<16x64xf32>
    %31 = arith.maximumf %29, %30 : vector<16x64xf32>
    %32 = arith.truncf %31 : vector<16x64xf32> to vector<16x64xbf16>
    %c0_24 = arith.constant 0 : index
    %c0_25 = arith.constant 0 : index
    %33 = vector.load %arg10[%c0_24, %c0_25] : memref<64x128xbf16, #tpu.memory_space<vmem>>, vector<64x128xbf16>
    %cst_26 = arith.constant dense<0.000000e+00> : vector<16x128xf32>
    %34 = tpu.matmul %32, %33, %cst_26 {dimension_numbers = #tpu.dot_dimension_numbers<[1], [0], [0], [1], [0, 0, 1, 1], [], []>} : vector<16x64xbf16>, vector<64x128xbf16>, vector<16x128xf32> -> vector<16x128xf32>
    %c0_27 = arith.constant 0 : index
    %c0_28 = arith.constant 0 : index
    %35 = vector.load %arg11[%c0_27, %c0_28] : memref<1x128xf32, #tpu.memory_space<vmem>>, vector<1x128xf32>
    %36 = vector.broadcast %35 : vector<1x128xf32> to vector<16x128xf32>
    %37 = arith.addf %34, %36 : vector<16x128xf32>
    %cst_29 = arith.constant 0.000000e+00 : f32
    %38 = vector.broadcast %cst_29 : f32 to vector<16x128xf32>
    %39 = arith.maximumf %37, %38 : vector<16x128xf32>
    %40 = arith.truncf %39 : vector<16x128xf32> to vector<16x128xbf16>
    %c0_30 = arith.constant 0 : index
    %c0_31 = arith.constant 0 : index
    %41 = vector.load %arg12[%c0_30, %c0_31] : memref<128x256xbf16, #tpu.memory_space<vmem>>, vector<128x256xbf16>
    %cst_32 = arith.constant dense<0.000000e+00> : vector<16x256xf32>
    %42 = tpu.matmul %40, %41, %cst_32 {dimension_numbers = #tpu.dot_dimension_numbers<[1], [0], [0], [1], [0, 0, 1, 1], [], []>} : vector<16x128xbf16>, vector<128x256xbf16>, vector<16x256xf32> -> vector<16x256xf32>
    %c0_33 = arith.constant 0 : index
    %c0_34 = arith.constant 0 : index
    %43 = vector.load %arg13[%c0_33, %c0_34] : memref<1x256xf32, #tpu.memory_space<vmem>>, vector<1x256xf32>
    %44 = vector.broadcast %43 : vector<1x256xf32> to vector<16x256xf32>
    %45 = arith.addf %42, %44 : vector<16x256xf32>
    %cst_35 = arith.constant 0.000000e+00 : f32
    %46 = vector.broadcast %cst_35 : f32 to vector<16x256xf32>
    %47 = arith.maximumf %45, %46 : vector<16x256xf32>
    %c0_36 = arith.constant 0 : index
    %c0_37 = arith.constant 0 : index
    %48 = vector.load %arg14[%c0_36, %c0_37] : memref<16x256xf32, #tpu.memory_space<vmem>>, vector<16x256xf32>
    tpu.vector_store %arg14[%c0_36, %c0_37], %47 {strides = array<i32>} : memref<16x256xf32, #tpu.memory_space<vmem>>, vector<16x256xf32>,
    return
  }
  func.func @transform_0(%arg0: i32) -> (i32, i32) {
    %c0_i32 = arith.constant 0 : i32
    %c0_i32_0 = arith.constant 0 : i32
    return %arg0, %c0_i32 : i32, i32
  }
  func.func @transform_1(%arg0: i32) -> (i32, i32) {
    %c0_i32 = arith.constant 0 : i32
    %c0_i32_0 = arith.constant 0 : i32
    %c0_i32_1 = arith.constant 0 : i32
    return %c0_i32, %c0_i32_0 : i32, i32
  }
  func.func @transform_2(%arg0: i32) -> (i32, i32) {
    %c0_i32 = arith.constant 0 : i32
    %c0_i32_0 = arith.constant 0 : i32
    %c0_i32_1 = arith.constant 0 : i32
    return %c0_i32, %c0_i32_0 : i32, i32
  }
  func.func @transform_3(%arg0: i32) -> (i32, i32) {
    %c0_i32 = arith.constant 0 : i32
    %c0_i32_0 = arith.constant 0 : i32
    %c0_i32_1 = arith.constant 0 : i32
    return %c0_i32, %c0_i32_0 : i32, i32
  }
  func.func @transform_4(%arg0: i32) -> (i32, i32) {
    %c0_i32 = arith.constant 0 : i32
    %c0_i32_0 = arith.constant 0 : i32
    %c0_i32_1 = arith.constant 0 : i32
    return %c0_i32, %c0_i32_0 : i32, i32
  }
  func.func @transform_5(%arg0: i32) -> (i32, i32) {
    %c0_i32 = arith.constant 0 : i32
    %c0_i32_0 = arith.constant 0 : i32
    %c0_i32_1 = arith.constant 0 : i32
    return %c0_i32, %c0_i32_0 : i32, i32
  }
  func.func @transform_6(%arg0: i32) -> (i32, i32) {
    %c0_i32 = arith.constant 0 : i32
    %c0_i32_0 = arith.constant 0 : i32
    %c0_i32_1 = arith.constant 0 : i32
    return %c0_i32, %c0_i32_0 : i32, i32
  }
  func.func @transform_7(%arg0: i32) -> (i32, i32) {
    %c0_i32 = arith.constant 0 : i32
    %c0_i32_0 = arith.constant 0 : i32
    %c0_i32_1 = arith.constant 0 : i32
    return %c0_i32, %c0_i32_0 : i32, i32
  }
  func.func @transform_8(%arg0: i32) -> (i32, i32) {
    %c0_i32 = arith.constant 0 : i32
    %c0_i32_0 = arith.constant 0 : i32
    %c0_i32_1 = arith.constant 0 : i32
    return %c0_i32, %c0_i32_0 : i32, i32
  }
  func.func @transform_9(%arg0: i32) -> (i32, i32) {
    %c0_i32 = arith.constant 0 : i32
    %c0_i32_0 = arith.constant 0 : i32
    %c0_i32_1 = arith.constant 0 : i32
    return %c0_i32, %c0_i32_0 : i32, i32
  }
  func.func @transform_10(%arg0: i32) -> (i32, i32) {
    %c0_i32 = arith.constant 0 : i32
    %c0_i32_0 = arith.constant 0 : i32
    %c0_i32_1 = arith.constant 0 : i32
    return %c0_i32, %c0_i32_0 : i32, i32
  }
  func.func @transform_11(%arg0: i32) -> (i32, i32) {
    %c0_i32 = arith.constant 0 : i32
    %c0_i32_0 = arith.constant 0 : i32
    %c0_i32_1 = arith.constant 0 : i32
    return %c0_i32, %c0_i32_0 : i32, i32
  }
  func.func @transform_12(%arg0: i32) -> (i32, i32) {
    %c0_i32 = arith.constant 0 : i32
    %c0_i32_0 = arith.constant 0 : i32
    %c0_i32_1 = arith.constant 0 : i32
    return %c0_i32, %c0_i32_0 : i32, i32
  }
  func.func @transform_13(%arg0: i32) -> (i32, i32) {
    %c0_i32 = arith.constant 0 : i32
    %c0_i32_0 = arith.constant 0 : i32
    return %arg0, %c0_i32 : i32, i32
  }
}

</mosaic_0001>

<llo_original>
// kernel: tpu_custom_call.1
$region0: #{tpu_custom_call.1}
  #allocation0 [shape = 'u32[]', space=smem, size = 0x4, offset = 0x4, fixed_abs, tag = 'smem constant byte address 0x4 - core index']
  #allocation1 [shape = 'u32[144,128]{1,0:T(1,128)}', space=vmem, size = 0x12000, scoped, tag = 'internal scratch']
  %s0 = inlined_call_operand.hbm [shape: bf16[16,256], index: 0, kind: input, shape index: {}]
  %s1 = inlined_call_operand.vmem [shape: bf16[256,128], index: 1, kind: input, shape index: {}]
  %s2 = inlined_call_operand.hbm [shape: f32[1,128], index: 2, kind: input, shape index: {}]
  %s3 = inlined_call_operand.vmem [shape: bf16[128,64], index: 3, kind: input, shape index: {}]
  %s4 = inlined_call_operand.hbm [shape: f32[1,64], index: 4, kind: input, shape index: {}]
  %s5 = inlined_call_operand.vmem [shape: bf16[64,32], index: 5, kind: input, shape index: {}]
  %s6 = inlined_call_operand.vmem [shape: f32[1,32], index: 6, kind: input, shape index: {}]
  %s7 = inlined_call_operand.hbm [shape: bf16[32,64], index: 7, kind: input, shape index: {}]
  %s8 = inlined_call_operand.vmem [shape: f32[1,64], index: 8, kind: input, shape index: {}]
  %s9 = inlined_call_operand.vmem [shape: bf16[64,128], index: 9, kind: input, shape index: {}]
  %s10 = inlined_call_operand.vmem [shape: f32[1,128], index: 10, kind: input, shape index: {}]
  %s11 = inlined_call_operand.hbm [shape: bf16[128,256], index: 11, kind: input, shape index: {}]
  %s12 = inlined_call_operand.vmem [shape: f32[1,256], index: 12, kind: input, shape index: {}]
  %s13 = inlined_call_operand.hbm [shape: f32[16,256], index: 13, kind: output, shape index: {}]
  %s14 = sld [smem:[#allocation0]]
  $region82: #{tpu_custom_call.1} parent=0
    _
  %s16 = ssub.s32 1, %s14
  %s17 = scalar_select 0, %s16, %s14
  $region1: #{tpu_custom_call.1} parent=0
    #allocation2 [shape = 'u8[8192]{0}', space=vmem, size = 0x2000, scoped, tag = 'input window, operand 0, single buffered']
    #allocation3 [shape = 's32[1]{0}', space=sflag, size = 0x4, scoped, tag = 'scoped memory for tpu_custom_call.1']
    #allocation4 [shape = 's32[1]{0}', space=sflag, size = 0x4, scoped, tag = 'scoped memory for tpu_custom_call.1']
    #allocation5 [shape = 'u8[512]{0}', space=vmem, size = 0x400, scoped, tag = 'input window, operand 2, single buffered']
    #allocation6 [shape = 's32[1]{0}', space=sflag, size = 0x4, scoped, tag = 'scoped memory for tpu_custom_call.1']
    #allocation7 [shape = 'u8[512]{0}', space=vmem, size = 0x400, scoped, tag = 'input window, operand 4, single buffered']
    #allocation8 [shape = 'u8[8192]{0}', space=vmem, size = 0x2000, scoped, tag = 'input window, operand 7, single buffered']
    #allocation9 [shape = 's32[1]{0}', space=sflag, size = 0x4, scoped, tag = 'scoped memory for tpu_custom_call.1']
    #allocation10 [shape = 'u8[65536]{0}', space=vmem, size = 0x10000, scoped, tag = 'input window, operand 11, single buffered']
    #allocation11 [shape = 'u8[16384]{0}', space=vmem, size = 0x4000, scoped, tag = 'output window, operand 0, single buffered']
    %18 = vsyncpa [#allocation3], 0
    %19 = vsyncpa [#allocation6], 0
    %20 = vsyncpa [#allocation9], 0
    %21 = vsyncpa [#allocation4], 0
    // Predicated region
    $region2: #{tpu_custom_call.1} parent=1 // pred_check
      _
    $region3: #{tpu_custom_call.1} parent=1 // pred_check_branch
      %23 = sbr.rel (0) target = $region5
    $region4: #{tpu_custom_call.1} parent=1 // pred_region
      %s25 = ssub.s32 256, 256
      %26 = vsyncadd [#allocation3], %s25
      %s27 = sshll.u32 [#allocation2], 4
      %s28 = int_to_ptr.vmem [resolvable:$true] %s27
      %33 = dma.hbm_to_vmem [thread:$0]  %s0, 256, %s28, [#allocation3], 128, 128, 8
    $region5: #{tpu_custom_call.1} parent=1 // pred_fallthru
      _
    // Predicated region
    $region6: #{tpu_custom_call.1} parent=1 // pred_check
      _
    $region7: #{tpu_custom_call.1} parent=1 // pred_check_branch
      %35 = sbr.rel (0) target = $region9
    $region8: #{tpu_custom_call.1} parent=1 // pred_region
      _
    $region9: #{tpu_custom_call.1} parent=1 // pred_fallthru
      _
    // Predicated region
    $region10: #{tpu_custom_call.1} parent=1 // pred_check
      _
    $region11: #{tpu_custom_call.1} parent=1 // pred_check_branch
      %37 = sbr.rel (0) target = $region13
    $region12: #{tpu_custom_call.1} parent=1 // pred_region
      %s39 = ssub.s32 16, 16
      %40 = vsyncadd [#allocation6], %s39
      %s42 = sshll.u32 [#allocation5], 4
      %s43 = int_to_ptr.vmem [resolvable:$true] %s42
      %45 = dma.hbm_to_vmem [thread:$0]  %s2, 16, %s43, [#allocation6]
    $region13: #{tpu_custom_call.1} parent=1 // pred_fallthru
      _
    // Predicated region
    $region14: #{tpu_custom_call.1} parent=1 // pred_check
      _
    $region15: #{tpu_custom_call.1} parent=1 // pred_check_branch
      %47 = sbr.rel (0) target = $region17
    $region16: #{tpu_custom_call.1} parent=1 // pred_region
      _
    $region17: #{tpu_custom_call.1} parent=1 // pred_fallthru
      _
    // Predicated region
    $region18: #{tpu_custom_call.1} parent=1 // pred_check
      _
    $region19: #{tpu_custom_call.1} parent=1 // pred_check_branch
      %49 = sbr.rel (0) target = $region21
    $region20: #{tpu_custom_call.1} parent=1 // pred_region
      %s51 = ssub.s32 16, 16
      %52 = vsyncadd [#allocation6], %s51
      %s54 = sshll.u32 [#allocation7], 4
      %s55 = int_to_ptr.vmem [resolvable:$true] %s54
      %57 = dma.hbm_to_vmem [thread:$0]  %s4, 16, %s55, [#allocation6]
    $region21: #{tpu_custom_call.1} parent=1 // pred_fallthru
      _
    // Predicated region
    $region22: #{tpu_custom_call.1} parent=1 // pred_check
      _
    $region23: #{tpu_custom_call.1} parent=1 // pred_check_branch
      %59 = sbr.rel (0) target = $region25
    $region24: #{tpu_custom_call.1} parent=1 // pred_region
      _
    $region25: #{tpu_custom_call.1} parent=1 // pred_fallthru
      _
    // Predicated region
    $region26: #{tpu_custom_call.1} parent=1 // pred_check
      _
    $region27: #{tpu_custom_call.1} parent=1 // pred_check_branch
      %61 = sbr.rel (0) target = $region29
    $region28: #{tpu_custom_call.1} parent=1 // pred_region
      _
    $region29: #{tpu_custom_call.1} parent=1 // pred_fallthru
      _
    // Predicated region
    $region30: #{tpu_custom_call.1} parent=1 // pred_check
      _
    $region31: #{tpu_custom_call.1} parent=1 // pred_check_branch
      %63 = sbr.rel (0) target = $region33
    $region32: #{tpu_custom_call.1} parent=1 // pred_region
      %s65 = ssub.s32 256, 256
      %66 = vsyncadd [#allocation9], %s65
      %s67 = sshll.u32 [#allocation8], 4
      %s68 = int_to_ptr.vmem [resolvable:$true] %s67
      %73 = dma.hbm_to_vmem [thread:$0]  %s7, 256, %s68, [#allocation9], 64, 64, 4
    $region33: #{tpu_custom_call.1} parent=1 // pred_fallthru
      _
    // Predicated region
    $region34: #{tpu_custom_call.1} parent=1 // pred_check
      _
    $region35: #{tpu_custom_call.1} parent=1 // pred_check_branch
      %75 = sbr.rel (0) target = $region37
    $region36: #{tpu_custom_call.1} parent=1 // pred_region
      _
    $region37: #{tpu_custom_call.1} parent=1 // pred_fallthru
      _
    // Predicated region
    $region38: #{tpu_custom_call.1} parent=1 // pred_check
      _
    $region39: #{tpu_custom_call.1} parent=1 // pred_check_branch
      %77 = sbr.rel (0) target = $region41
    $region40: #{tpu_custom_call.1} parent=1 // pred_region
      _
    $region41: #{tpu_custom_call.1} parent=1 // pred_fallthru
      _
    // Predicated region
    $region42: #{tpu_custom_call.1} parent=1 // pred_check
      _
    $region43: #{tpu_custom_call.1} parent=1 // pred_check_branch
      %79 = sbr.rel (0) target = $region45
    $region44: #{tpu_custom_call.1} parent=1 // pred_region
      _
    $region45: #{tpu_custom_call.1} parent=1 // pred_fallthru
      _
    // Predicated region
    $region46: #{tpu_custom_call.1} parent=1 // pred_check
      _
    $region47: #{tpu_custom_call.1} parent=1 // pred_check_branch
      %81 = sbr.rel (0) target = $region49
    $region48: #{tpu_custom_call.1} parent=1 // pred_region
      %s83 = ssub.s32 2048, 2048
      %84 = vsyncadd [#allocation9], %s83
      %s85 = sshll.u32 [#allocation10], 4
      %s86 = int_to_ptr.vmem [resolvable:$true] %s85
      %91 = dma.hbm_to_vmem [thread:$0]  %s11, 2048, %s86, [#allocation9], 128, 128, 8
    $region49: #{tpu_custom_call.1} parent=1 // pred_fallthru
      _
    // Predicated region
    $region50: #{tpu_custom_call.1} parent=1 // pred_check
      _
    $region51: #{tpu_custom_call.1} parent=1 // pred_check_branch
      %93 = sbr.rel (0) target = $region53
    $region52: #{tpu_custom_call.1} parent=1 // pred_region
      _
    $region53: #{tpu_custom_call.1} parent=1 // pred_fallthru
      _
    // Predicated region
    $region54: #{tpu_custom_call.1} parent=1 // pred_check
      _
    $region55: #{tpu_custom_call.1} parent=1 // pred_check_branch
      %95 = sbr.rel (0) target = $region57
    $region56: #{tpu_custom_call.1} parent=1 // pred_region
      %96 = dma.done [#allocation3], 256
    $region57: #{tpu_custom_call.1} parent=1 // pred_fallthru
      _
    // Predicated region
    $region58: #{tpu_custom_call.1} parent=1 // pred_check
      _
    $region59: #{tpu_custom_call.1} parent=1 // pred_check_branch
      %98 = sbr.rel (0) target = $region61
    $region60: #{tpu_custom_call.1} parent=1 // pred_region
      %99 = dma.done [#allocation6], 16
    $region61: #{tpu_custom_call.1} parent=1 // pred_fallthru
      _
    // Predicated region
    $region62: #{tpu_custom_call.1} parent=1 // pred_check
      _
    $region63: #{tpu_custom_call.1} parent=1 // pred_check_branch
      %101 = sbr.rel (0) target = $region65
    $region64: #{tpu_custom_call.1} parent=1 // pred_region
      %102 = dma.done [#allocation6], 16
    $region65: #{tpu_custom_call.1} parent=1 // pred_fallthru
      _
    // Predicated region
    $region66: #{tpu_custom_call.1} parent=1 // pred_check
      _
    $region67: #{tpu_custom_call.1} parent=1 // pred_check_branch
      %104 = sbr.rel (0) target = $region69
    $region68: #{tpu_custom_call.1} parent=1 // pred_region
      %105 = dma.done [#allocation9], 256
    $region69: #{tpu_custom_call.1} parent=1 // pred_fallthru
      _
    // Predicated region
    $region70: #{tpu_custom_call.1} parent=1 // pred_check
      _
    $region71: #{tpu_custom_call.1} parent=1 // pred_check_branch
      %107 = sbr.rel (0) target = $region73
    $region72: #{tpu_custom_call.1} parent=1 // pred_region
      %108 = dma.done [#allocation9], 2048
    $region73: #{tpu_custom_call.1} parent=1 // pred_fallthru
      _
    %v110 = vld [vmem:[#allocation2] sm:$0xff]
    %v111 = vld [vmem:[#allocation2 + $0x8] sm:$0xff]
    %v112 = vld [vmem:[%s1] sm:$0xf]
    %v113 = vld [vmem:[%s1 + $0x4] sm:$0xf]
    %v114 = vld [vmem:[%s1 + $0x8] sm:$0xf]
    %v115 = vld [vmem:[%s1 + $0xc] sm:$0xf]
    %v116 = vld [vmem:[%s1 + $0x10] sm:$0xf]
    %v117 = vld [vmem:[%s1 + $0x14] sm:$0xf]
    %v118 = vld [vmem:[%s1 + $0x18] sm:$0xf]
    %v119 = vld [vmem:[%s1 + $0x1c] sm:$0xf]
    %v120 = vld [vmem:[%s1 + $0x20] sm:$0xf]
    %v121 = vld [vmem:[%s1 + $0x24] sm:$0xf]
    %v122 = vld [vmem:[%s1 + $0x28] sm:$0xf]
    %v123 = vld [vmem:[%s1 + $0x2c] sm:$0xf]
    %v124 = vld [vmem:[%s1 + $0x30] sm:$0xf]
    %v125 = vld [vmem:[%s1 + $0x34] sm:$0xf]
    %v126 = vld [vmem:[%s1 + $0x38] sm:$0xf]
    %v127 = vld [vmem:[%s1 + $0x3c] sm:$0xf]
    %v128 = vld [vmem:[%s1 + $0x40] sm:$0xf]
    %v129 = vld [vmem:[%s1 + $0x44] sm:$0xf]
    %v130 = vld [vmem:[%s1 + $0x48] sm:$0xf]
    %v131 = vld [vmem:[%s1 + $0x4c] sm:$0xf]
    %v132 = vld [vmem:[%s1 + $0x50] sm:$0xf]
    %v133 = vld [vmem:[%s1 + $0x54] sm:$0xf]
    %v134 = vld [vmem:[%s1 + $0x58] sm:$0xf]
    %v135 = vld [vmem:[%s1 + $0x5c] sm:$0xf]
    %v136 = vld [vmem:[%s1 + $0x60] sm:$0xf]
    %v137 = vld [vmem:[%s1 + $0x64] sm:$0xf]
    %v138 = vld [vmem:[%s1 + $0x68] sm:$0xf]
    %v139 = vld [vmem:[%s1 + $0x6c] sm:$0xf]
    %v140 = vld [vmem:[%s1 + $0x70] sm:$0xf]
    %v141 = vld [vmem:[%s1 + $0x74] sm:$0xf]
    %v142 = vld [vmem:[%s1 + $0x78] sm:$0xf]
    %v143 = vld [vmem:[%s1 + $0x7c] sm:$0xf]
    %v144 = vld [vmem:[#allocation5] sm:$0x1]
    %v146 = vlaneseq
    %v147 = vshrl.u32 %v146, 7
    %v148 = vsub.s32 0, %v147
    %v149 = vrot.slane %v144, %v148
    %v153 = vunpack.c.l.b16 %v110
    %v154 = vunpack.c.h.b16 %v110
    %v155 = vunpack.c.l.b16 %v111
    %v156 = vunpack.c.h.b16 %v111
    %v157 = vpack.c.b16 %v155, %v153
    %v158 = vpack.c.b16 %v156, %v154
    %v193 = vunpack.c.l.b16 %v112
    %v194 = vunpack.c.l.b16 %v113
    %v195 = vunpack.c.l.b16 %v114
    %v196 = vunpack.c.l.b16 %v115
    %v197 = vunpack.c.l.b16 %v116
    %v198 = vunpack.c.l.b16 %v117
    %v199 = vunpack.c.l.b16 %v118
    %v200 = vunpack.c.l.b16 %v119
    %v201 = vunpack.c.l.b16 %v120
    %v202 = vunpack.c.l.b16 %v121
    %v203 = vunpack.c.l.b16 %v122
    %v204 = vunpack.c.l.b16 %v123
    %v205 = vunpack.c.l.b16 %v124
    %v206 = vunpack.c.l.b16 %v125
    %v207 = vunpack.c.l.b16 %v126
    %v208 = vunpack.c.l.b16 %v127
    %v209 = vunpack.c.l.b16 %v128
    %v210 = vunpack.c.l.b16 %v129
    %v211 = vunpack.c.l.b16 %v130
    %v212 = vunpack.c.l.b16 %v131
    %v213 = vunpack.c.l.b16 %v132
    %v214 = vunpack.c.l.b16 %v133
    %v215 = vunpack.c.l.b16 %v134
    %v216 = vunpack.c.l.b16 %v135
    %v217 = vunpack.c.l.b16 %v136
    %v218 = vunpack.c.l.b16 %v137
    %v219 = vunpack.c.l.b16 %v138
    %v220 = vunpack.c.l.b16 %v139
    %v221 = vunpack.c.l.b16 %v140
    %v222 = vunpack.c.l.b16 %v141
    %v223 = vunpack.c.l.b16 %v142
    %v224 = vunpack.c.l.b16 %v143
    %v225 = vpack.c.b16 %v194, %v193
    %v226 = vpack.c.b16 %v196, %v195
    %v227 = vpack.c.b16 %v198, %v197
    %v228 = vpack.c.b16 %v200, %v199
    %v229 = vpack.c.b16 %v202, %v201
    %v230 = vpack.c.b16 %v204, %v203
    %v231 = vpack.c.b16 %v206, %v205
    %v232 = vpack.c.b16 %v208, %v207
    %v233 = vpack.c.b16 %v210, %v209
    %v234 = vpack.c.b16 %v212, %v211
    %v235 = vpack.c.b16 %v214, %v213
    %v236 = vpack.c.b16 %v216, %v215
    %v237 = vpack.c.b16 %v218, %v217
    %v238 = vpack.c.b16 %v220, %v219
    %v239 = vpack.c.b16 %v222, %v221
    %v240 = vpack.c.b16 %v224, %v223
    %257 = vmatprep.subr.bf16.mxu0 0
    %258 = vmatpush1.bf16.msra.mxu0 %v225
    %259 = vmatprep.subr.bf16.mxu0 0
    %260 = vmatpush1.bf16.msra.mxu0 %v226
    %261 = vmatprep.subr.bf16.mxu0 0
    %262 = vmatpush1.bf16.msra.mxu0 %v227
    %263 = vmatprep.subr.bf16.mxu0 0
    %264 = vmatpush1.bf16.msra.mxu0 %v228
    %265 = vmatprep.subr.bf16.mxu0 0
    %266 = vmatpush1.bf16.msra.mxu0 %v229
    %267 = vmatprep.subr.bf16.mxu0 0
    %268 = vmatpush1.bf16.msra.mxu0 %v230
    %269 = vmatprep.subr.bf16.mxu0 0
    %270 = vmatpush1.bf16.msra.mxu0 %v231
    %271 = vmatprep.subr.bf16.mxu0 0
    %272 = vmatpush1.bf16.msra.mxu0 %v232
    %273 = vmatprep.subr.bf16.mxu0 0
    %274 = vmatpush1.bf16.msra.mxu0 %v233
    %275 = vmatprep.subr.bf16.mxu0 0
    %276 = vmatpush1.bf16.msra.mxu0 %v234
    %277 = vmatprep.subr.bf16.mxu0 0
    %278 = vmatpush1.bf16.msra.mxu0 %v235
    %279 = vmatprep.subr.bf16.mxu0 0
    %280 = vmatpush1.bf16.msra.mxu0 %v236
    %281 = vmatprep.subr.bf16.mxu0 0
    %282 = vmatpush1.bf16.msra.mxu0 %v237
    %283 = vmatprep.subr.bf16.mxu0 0
    %284 = vmatpush1.bf16.msra.mxu0 %v238
    %285 = vmatprep.subr.bf16.mxu0 0
    %286 = vmatpush1.bf16.msra.mxu0 %v239
    %287 = vmatprep.subr.bf16.mxu0 0
    %288 = vmatpush1.bf16.msra.mxu0 %v240
    %289 = vmatprep.mubr.bf16.mxu0 %v158
    %290 = vmatmul.mubr.bf16.gmra.mrb[0].mxu0 %v157
    %v291 = vpop.f32.mrb[0].mxu0
    %v292 = vadd.f32 %v149, %v291
    %v293 = vpop.f32.mrb[0].mxu0
    %v294 = vpop.f32.mrb[0].mxu0
    %v295 = vadd.f32 %v149, %v294
    %v296 = vpop.f32.mrb[0].mxu0
    %297 = vdwg.mxu0
    %v298 = vmax.f32 %v292, 0.0
    %v299 = vmax.f32 %v295, 0.0
    %v300 = vpack.c.bf16 %v299, %v298
    %v301 = vld [vmem:[%s3] sm:$0xf]
    %v302 = vld [vmem:[%s3 + $0x4] sm:$0xf]
    %v303 = vld [vmem:[%s3 + $0x8] sm:$0xf]
    %v304 = vld [vmem:[%s3 + $0xc] sm:$0xf]
    %v305 = vld [vmem:[%s3 + $0x10] sm:$0xf]
    %v306 = vld [vmem:[%s3 + $0x14] sm:$0xf]
    %v307 = vld [vmem:[%s3 + $0x18] sm:$0xf]
    %v308 = vld [vmem:[%s3 + $0x1c] sm:$0xf]
    %v309 = vld [vmem:[%s3 + $0x20] sm:$0xf]
    %v310 = vld [vmem:[%s3 + $0x24] sm:$0xf]
    %v311 = vld [vmem:[%s3 + $0x28] sm:$0xf]
    %v312 = vld [vmem:[%s3 + $0x2c] sm:$0xf]
    %v313 = vld [vmem:[%s3 + $0x30] sm:$0xf]
    %v314 = vld [vmem:[%s3 + $0x34] sm:$0xf]
    %v315 = vld [vmem:[%s3 + $0x38] sm:$0xf]
    %v316 = vld [vmem:[%s3 + $0x3c] sm:$0xf]
    %v317 = vld [vmem:[#allocation7] sm:$0x1]
    %v319 = vlaneseq
    %v320 = vshrl.u32 %v319, 7
    %v321 = vsub.s32 0, %v320
    %v322 = vrot.slane %v317, %v321
    %v340 = vunpack.c.l.b16 %v301
    %v341 = vunpack.c.l.b16 %v302
    %v342 = vunpack.c.l.b16 %v303
    %v343 = vunpack.c.l.b16 %v304
    %v344 = vunpack.c.l.b16 %v305
    %v345 = vunpack.c.l.b16 %v306
    %v346 = vunpack.c.l.b16 %v307
    %v347 = vunpack.c.l.b16 %v308
    %v348 = vunpack.c.l.b16 %v309
    %v349 = vunpack.c.l.b16 %v310
    %v350 = vunpack.c.l.b16 %v311
    %v351 = vunpack.c.l.b16 %v312
    %v352 = vunpack.c.l.b16 %v313
    %v353 = vunpack.c.l.b16 %v314
    %v354 = vunpack.c.l.b16 %v315
    %v355 = vunpack.c.l.b16 %v316
    %v356 = vpack.c.b16 %v341, %v340
    %v357 = vpack.c.b16 %v343, %v342
    %v358 = vpack.c.b16 %v345, %v344
    %v359 = vpack.c.b16 %v347, %v346
    %v360 = vpack.c.b16 %v349, %v348
    %v361 = vpack.c.b16 %v351, %v350
    %v362 = vpack.c.b16 %v353, %v352
    %v363 = vpack.c.b16 %v355, %v354
    %372 = vmatprep.subr.bf16.mxu0 0
    %373 = vmatpush1.bf16.msra.mxu0 %v356
    %374 = vmatprep.subr.bf16.mxu0 0
    %375 = vmatpush1.bf16.msra.mxu0 %v357
    %376 = vmatprep.subr.bf16.mxu0 0
    %377 = vmatpush1.bf16.msra.mxu0 %v358
    %378 = vmatprep.subr.bf16.mxu0 0
    %379 = vmatpush1.bf16.msra.mxu0 %v359
    %380 = vmatprep.subr.bf16.mxu0 0
    %381 = vmatpush1.bf16.msra.mxu0 %v360
    %382 = vmatprep.subr.bf16.mxu0 0
    %383 = vmatpush1.bf16.msra.mxu0 %v361
    %384 = vmatprep.subr.bf16.mxu0 0
    %385 = vmatpush1.bf16.msra.mxu0 %v362
    %386 = vmatprep.subr.bf16.mxu0 0
    %387 = vmatpush1.bf16.msra.mxu0 %v363
    %388 = vmatprep.subr.bf16.mxu0 0
    %389 = vmatpush1.bf16.msra.mxu0 0
    %390 = vmatprep.subr.bf16.mxu0 0
    %391 = vmatpush1.bf16.msra.mxu0 0
    %392 = vmatprep.subr.bf16.mxu0 0
    %393 = vmatpush1.bf16.msra.mxu0 0
    %394 = vmatprep.subr.bf16.mxu0 0
    %395 = vmatpush1.bf16.msra.mxu0 0
    %396 = vmatprep.subr.bf16.mxu0 0
    %397 = vmatpush1.bf16.msra.mxu0 0
    %398 = vmatprep.subr.bf16.mxu0 0
    %399 = vmatpush1.bf16.msra.mxu0 0
    %400 = vmatprep.subr.bf16.mxu0 0
    %401 = vmatpush1.bf16.msra.mxu0 0
    %402 = vmatprep.subr.bf16.mxu0 0
    %403 = vmatpush1.bf16.msra.mxu0 0
    %404 = vmatprep.mubr.bf16.mxu0 0
    %405 = vmatmul.mubr.bf16.gmra.mrb[0].mxu0 %v300
    %v406 = vpop.f32.mrb[0].mxu0
    %v407 = vadd.f32 %v322, %v406
    %v408 = vpop.f32.mrb[0].mxu0
    %v409 = vpop.f32.mrb[0].mxu0
    %v410 = vadd.f32 %v322, %v409
    %v411 = vpop.f32.mrb[0].mxu0
    %412 = vdwg.mxu0
    %v413 = vmax.f32 %v407, 0.0
    %v414 = vmax.f32 %v410, 0.0
    %v415 = vpack.c.bf16 %v414, %v413
    %v416 = vld [vmem:[%s5] sm:$0xf]
    %v417 = vld [vmem:[%s5 + $0x4] sm:$0xf]
    %v418 = vld [vmem:[%s5 + $0x8] sm:$0xf]
    %v419 = vld [vmem:[%s5 + $0xc] sm:$0xf]
    %v420 = vld [vmem:[%s5 + $0x10] sm:$0xf]
    %v421 = vld [vmem:[%s5 + $0x14] sm:$0xf]
    %v422 = vld [vmem:[%s5 + $0x18] sm:$0xf]
    %v423 = vld [vmem:[%s5 + $0x1c] sm:$0xf]
    %v424 = vld [vmem:[%s6] sm:$0x1]
    %v426 = vlaneseq
    %v427 = vshrl.u32 %v426, 7
    %v428 = vsub.s32 0, %v427
    %v429 = vrot.slane %v424, %v428
    %v439 = vunpack.c.l.b16 %v416
    %v440 = vunpack.c.l.b16 %v417
    %v441 = vunpack.c.l.b16 %v418
    %v442 = vunpack.c.l.b16 %v419
    %v443 = vunpack.c.l.b16 %v420
    %v444 = vunpack.c.l.b16 %v421
    %v445 = vunpack.c.l.b16 %v422
    %v446 = vunpack.c.l.b16 %v423
    %v447 = vpack.c.b16 %v440, %v439
    %v448 = vpack.c.b16 %v442, %v441
    %v449 = vpack.c.b16 %v444, %v443
    %v450 = vpack.c.b16 %v446, %v445
    %vm455 = vcmask 523264
    %v457 = vsel %vm455, %v415, 0
    %459 = vmatprep.subr.bf16.mxu0 0
    %460 = vmatpush1.bf16.msra.mxu0 %v447
    %461 = vmatprep.subr.bf16.mxu0 0
    %462 = vmatpush1.bf16.msra.mxu0 %v448
    %463 = vmatprep.subr.bf16.mxu0 0
    %464 = vmatpush1.bf16.msra.mxu0 %v449
    %465 = vmatprep.subr.bf16.mxu0 0
    %466 = vmatpush1.bf16.msra.mxu0 %v450
    %467 = vmatprep.subr.bf16.mxu0 0
    %468 = vmatpush1.bf16.msra.mxu0 0
    %469 = vmatprep.subr.bf16.mxu0 0
    %470 = vmatpush1.bf16.msra.mxu0 0
    %471 = vmatprep.subr.bf16.mxu0 0
    %472 = vmatpush1.bf16.msra.mxu0 0
    %473 = vmatprep.subr.bf16.mxu0 0
    %474 = vmatpush1.bf16.msra.mxu0 0
    %475 = vmatprep.subr.bf16.mxu0 0
    %476 = vmatpush1.bf16.msra.mxu0 0
    %477 = vmatprep.subr.bf16.mxu0 0
    %478 = vmatpush1.bf16.msra.mxu0 0
    %479 = vmatprep.subr.bf16.mxu0 0
    %480 = vmatpush1.bf16.msra.mxu0 0
    %481 = vmatprep.subr.bf16.mxu0 0
    %482 = vmatpush1.bf16.msra.mxu0 0
    %483 = vmatprep.subr.bf16.mxu0 0
    %484 = vmatpush1.bf16.msra.mxu0 0
    %485 = vmatprep.subr.bf16.mxu0 0
    %486 = vmatpush1.bf16.msra.mxu0 0
    %487 = vmatprep.subr.bf16.mxu0 0
    %488 = vmatpush1.bf16.msra.mxu0 0
    %489 = vmatprep.subr.bf16.mxu0 0
    %490 = vmatpush1.bf16.msra.mxu0 0
    %491 = vmatprep.mubr.bf16.mxu0 0
    %492 = vmatmul.mubr.bf16.gmra.mrb[0].mxu0 %v457
    %v493 = vpop.f32.mrb[0].mxu0
    %v494 = vadd.f32 %v429, %v493
    %v495 = vpop.f32.mrb[0].mxu0
    %v496 = vpop.f32.mrb[0].mxu0
    %v497 = vadd.f32 %v429, %v496
    %v498 = vpop.f32.mrb[0].mxu0
    %499 = vdwg.mxu0
    %v500 = vmax.f32 %v494, 0.0
    %v501 = vmax.f32 %v497, 0.0
    %v502 = vpack.c.bf16 %v501, %v500
    %v503 = vld [vmem:[#allocation8] sm:$0xf]
    %v504 = vld [vmem:[#allocation8 + $0x4] sm:$0xf]
    %v505 = vld [vmem:[#allocation8 + $0x8] sm:$0xf]
    %v506 = vld [vmem:[#allocation8 + $0xc] sm:$0xf]
    %v507 = vld [vmem:[%s8] sm:$0x1]
    %v509 = vlaneseq
    %v510 = vshrl.u32 %v509, 7
    %v511 = vsub.s32 0, %v510
    %v512 = vrot.slane %v507, %v511
    %v518 = vunpack.c.l.b16 %v503
    %v519 = vunpack.c.l.b16 %v504
    %v520 = vunpack.c.l.b16 %v505
    %v521 = vunpack.c.l.b16 %v506
    %v522 = vpack.c.b16 %v519, %v518
    %v523 = vpack.c.b16 %v521, %v520
    %vm526 = vcmask 261120
    %v528 = vsel %vm526, %v502, 0
    %530 = vmatprep.subr.bf16.mxu0 0
    %531 = vmatpush1.bf16.msra.mxu0 %v522
    %532 = vmatprep.subr.bf16.mxu0 0
    %533 = vmatpush1.bf16.msra.mxu0 %v523
    %534 = vmatprep.subr.bf16.mxu0 0
    %535 = vmatpush1.bf16.msra.mxu0 0
    %536 = vmatprep.subr.bf16.mxu0 0
    %537 = vmatpush1.bf16.msra.mxu0 0
    %538 = vmatprep.subr.bf16.mxu0 0
    %539 = vmatpush1.bf16.msra.mxu0 0
    %540 = vmatprep.subr.bf16.mxu0 0
    %541 = vmatpush1.bf16.msra.mxu0 0
    %542 = vmatprep.subr.bf16.mxu0 0
    %543 = vmatpush1.bf16.msra.mxu0 0
    %544 = vmatprep.subr.bf16.mxu0 0
    %545 = vmatpush1.bf16.msra.mxu0 0
    %546 = vmatprep.subr.bf16.mxu0 0
    %547 = vmatpush1.bf16.msra.mxu0 0
    %548 = vmatprep.subr.bf16.mxu0 0
    %549 = vmatpush1.bf16.msra.mxu0 0
    %550 = vmatprep.subr.bf16.mxu0 0
    %551 = vmatpush1.bf16.msra.mxu0 0
    %552 = vmatprep.subr.bf16.mxu0 0
    %553 = vmatpush1.bf16.msra.mxu0 0
    %554 = vmatprep.subr.bf16.mxu0 0
    %555 = vmatpush1.bf16.msra.mxu0 0
    %556 = vmatprep.subr.bf16.mxu0 0
    %557 = vmatpush1.bf16.msra.mxu0 0
    %558 = vmatprep.subr.bf16.mxu0 0
    %559 = vmatpush1.bf16.msra.mxu0 0
    %560 = vmatprep.subr.bf16.mxu0 0
    %561 = vmatpush1.bf16.msra.mxu0 0
    %562 = vmatprep.mubr.bf16.mxu0 0
    %563 = vmatmul.mubr.bf16.gmra.mrb[0].mxu0 %v528
    %v564 = vpop.f32.mrb[0].mxu0
    %v565 = vadd.f32 %v512, %v564
    %v566 = vpop.f32.mrb[0].mxu0
    %v567 = vpop.f32.mrb[0].mxu0
    %v568 = vadd.f32 %v512, %v567
    %v569 = vpop.f32.mrb[0].mxu0
    %570 = vdwg.mxu0
    %v571 = vmax.f32 %v565, 0.0
    %v572 = vmax.f32 %v568, 0.0
    %v573 = vpack.c.bf16 %v572, %v571
    %v574 = vld [vmem:[%s9] sm:$0xf]
    %v575 = vld [vmem:[%s9 + $0x4] sm:$0xf]
    %v576 = vld [vmem:[%s9 + $0x8] sm:$0xf]
    %v577 = vld [vmem:[%s9 + $0xc] sm:$0xf]
    %v578 = vld [vmem:[%s9 + $0x10] sm:$0xf]
    %v579 = vld [vmem:[%s9 + $0x14] sm:$0xf]
    %v580 = vld [vmem:[%s9 + $0x18] sm:$0xf]
    %v581 = vld [vmem:[%s9 + $0x1c] sm:$0xf]
    %v582 = vld [vmem:[%s10] sm:$0x1]
    %v584 = vlaneseq
    %v585 = vshrl.u32 %v584, 7
    %v586 = vsub.s32 0, %v585
    %v587 = vrot.slane %v582, %v586
    %v597 = vunpack.c.l.b16 %v574
    %v598 = vunpack.c.l.b16 %v575
    %v599 = vunpack.c.l.b16 %v576
    %v600 = vunpack.c.l.b16 %v577
    %v601 = vunpack.c.l.b16 %v578
    %v602 = vunpack.c.l.b16 %v579
    %v603 = vunpack.c.l.b16 %v580
    %v604 = vunpack.c.l.b16 %v581
    %v605 = vpack.c.b16 %v598, %v597
    %v606 = vpack.c.b16 %v600, %v599
    %v607 = vpack.c.b16 %v602, %v601
    %v608 = vpack.c.b16 %v604, %v603
    %v614 = vsel %vm455, %v573, 0
    %616 = vmatprep.subr.bf16.mxu0 0
    %617 = vmatpush1.bf16.msra.mxu0 %v605
    %618 = vmatprep.subr.bf16.mxu0 0
    %619 = vmatpush1.bf16.msra.mxu0 %v606
    %620 = vmatprep.subr.bf16.mxu0 0
    %621 = vmatpush1.bf16.msra.mxu0 %v607
    %622 = vmatprep.subr.bf16.mxu0 0
    %623 = vmatpush1.bf16.msra.mxu0 %v608
    %624 = vmatprep.subr.bf16.mxu0 0
    %625 = vmatpush1.bf16.msra.mxu0 0
    %626 = vmatprep.subr.bf16.mxu0 0
    %627 = vmatpush1.bf16.msra.mxu0 0
    %628 = vmatprep.subr.bf16.mxu0 0
    %629 = vmatpush1.bf16.msra.mxu0 0
    %630 = vmatprep.subr.bf16.mxu0 0
    %631 = vmatpush1.bf16.msra.mxu0 0
    %632 = vmatprep.subr.bf16.mxu0 0
    %633 = vmatpush1.bf16.msra.mxu0 0
    %634 = vmatprep.subr.bf16.mxu0 0
    %635 = vmatpush1.bf16.msra.mxu0 0
    %636 = vmatprep.subr.bf16.mxu0 0
    %637 = vmatpush1.bf16.msra.mxu0 0
    %638 = vmatprep.subr.bf16.mxu0 0
    %639 = vmatpush1.bf16.msra.mxu0 0
    %640 = vmatprep.subr.bf16.mxu0 0
    %641 = vmatpush1.bf16.msra.mxu0 0
    %642 = vmatprep.subr.bf16.mxu0 0
    %643 = vmatpush1.bf16.msra.mxu0 0
    %644 = vmatprep.subr.bf16.mxu0 0
    %645 = vmatpush1.bf16.msra.mxu0 0
    %646 = vmatprep.subr.bf16.mxu0 0
    %647 = vmatpush1.bf16.msra.mxu0 0
    %648 = vmatprep.mubr.bf16.mxu0 0
    %649 = vmatmul.mubr.bf16.gmra.mrb[0].mxu0 %v614
    %v650 = vpop.f32.mrb[0].mxu0
    %v651 = vadd.f32 %v587, %v650
    %v652 = vpop.f32.mrb[0].mxu0
    %v653 = vpop.f32.mrb[0].mxu0
    %v654 = vadd.f32 %v587, %v653
    %v655 = vpop.f32.mrb[0].mxu0
    %656 = vdwg.mxu0
    %v657 = vmax.f32 %v651, 0.0
    %v658 = vmax.f32 %v654, 0.0
    %v659 = vpack.c.bf16 %v658, %v657
    %v660 = vld [vmem:[#allocation10] sm:$0xff]
    %v661 = vld [vmem:[#allocation10 + $0x8] sm:$0xff]
    %v662 = vld [vmem:[#allocation10 + $0x10] sm:$0xff]
    %v663 = vld [vmem:[#allocation10 + $0x18] sm:$0xff]
    %v664 = vld [vmem:[#allocation10 + $0x20] sm:$0xff]
    %v665 = vld [vmem:[#allocation10 + $0x28] sm:$0xff]
    %v666 = vld [vmem:[#allocation10 + $0x30] sm:$0xff]
    %v667 = vld [vmem:[#allocation10 + $0x38] sm:$0xff]
    %v668 = vld [vmem:[#allocation10 + $0x40] sm:$0xff]
    %v669 = vld [vmem:[#allocation10 + $0x48] sm:$0xff]
    %v670 = vld [vmem:[#allocation10 + $0x50] sm:$0xff]
    %v671 = vld [vmem:[#allocation10 + $0x58] sm:$0xff]
    %v672 = vld [vmem:[#allocation10 + $0x60] sm:$0xff]
    %v673 = vld [vmem:[#allocation10 + $0x68] sm:$0xff]
    %v674 = vld [vmem:[#allocation10 + $0x70] sm:$0xff]
    %v675 = vld [vmem:[#allocation10 + $0x78] sm:$0xff]
    %v676 = vld [vmem:[%s12] sm:$0x3]
    %v678 = vlaneseq
    %v679 = vshrl.u32 %v678, 7
    %v680 = vsub.s32 0, %v679
    %v681 = vrot.slane %v676, %v680
    %v682 = vlaneseq
    %v683 = vshrl.u32 %v682, 7
    %v684 = vsub.s32 1, %v683
    %v685 = vrot.slane %v676, %v684
    %v704 = vunpack.c.l.b16 %v660
    %v705 = vunpack.c.h.b16 %v660
    %v706 = vunpack.c.l.b16 %v661
    %v707 = vunpack.c.h.b16 %v661
    %v708 = vunpack.c.l.b16 %v662
    %v709 = vunpack.c.h.b16 %v662
    %v710 = vunpack.c.l.b16 %v663
    %v711 = vunpack.c.h.b16 %v663
    %v712 = vunpack.c.l.b16 %v664
    %v713 = vunpack.c.h.b16 %v664
    %v714 = vunpack.c.l.b16 %v665
    %v715 = vunpack.c.h.b16 %v665
    %v716 = vunpack.c.l.b16 %v666
    %v717 = vunpack.c.h.b16 %v666
    %v718 = vunpack.c.l.b16 %v667
    %v719 = vunpack.c.h.b16 %v667
    %v720 = vunpack.c.l.b16 %v668
    %v721 = vunpack.c.h.b16 %v668
    %v722 = vunpack.c.l.b16 %v669
    %v723 = vunpack.c.h.b16 %v669
    %v724 = vunpack.c.l.b16 %v670
    %v725 = vunpack.c.h.b16 %v670
    %v726 = vunpack.c.l.b16 %v671
    %v727 = vunpack.c.h.b16 %v671
    %v728 = vunpack.c.l.b16 %v672
    %v729 = vunpack.c.h.b16 %v672
    %v730 = vunpack.c.l.b16 %v673
    %v731 = vunpack.c.h.b16 %v673
    %v732 = vunpack.c.l.b16 %v674
    %v733 = vunpack.c.h.b16 %v674
    %v734 = vunpack.c.l.b16 %v675
    %v735 = vunpack.c.h.b16 %v675
    %v736 = vpack.c.b16 %v706, %v704
    %v737 = vpack.c.b16 %v707, %v705
    %v738 = vpack.c.b16 %v710, %v708
    %v739 = vpack.c.b16 %v711, %v709
    %v740 = vpack.c.b16 %v714, %v712
    %v741 = vpack.c.b16 %v715, %v713
    %v742 = vpack.c.b16 %v718, %v716
    %v743 = vpack.c.b16 %v719, %v717
    %v744 = vpack.c.b16 %v722, %v720
    %v745 = vpack.c.b16 %v723, %v721
    %v746 = vpack.c.b16 %v726, %v724
    %v747 = vpack.c.b16 %v727, %v725
    %v748 = vpack.c.b16 %v730, %v728
    %v749 = vpack.c.b16 %v731, %v729
    %v750 = vpack.c.b16 %v734, %v732
    %v751 = vpack.c.b16 %v735, %v733
    %768 = vmatprep.subr.bf16.mxu0 %v737
    %769 = vmatpush1.bf16.msra.mxu0 %v736
    %770 = vmatprep.subr.bf16.mxu0 %v739
    %771 = vmatpush1.bf16.msra.mxu0 %v738
    %772 = vmatprep.subr.bf16.mxu0 %v741
    %773 = vmatpush1.bf16.msra.mxu0 %v740
    %774 = vmatprep.subr.bf16.mxu0 %v743
    %775 = vmatpush1.bf16.msra.mxu0 %v742
    %776 = vmatprep.subr.bf16.mxu0 %v745
    %777 = vmatpush1.bf16.msra.mxu0 %v744
    %778 = vmatprep.subr.bf16.mxu0 %v747
    %779 = vmatpush1.bf16.msra.mxu0 %v746
    %780 = vmatprep.subr.bf16.mxu0 %v749
    %781 = vmatpush1.bf16.msra.mxu0 %v748
    %782 = vmatprep.subr.bf16.mxu0 %v751
    %783 = vmatpush1.bf16.msra.mxu0 %v750
    %784 = vmatprep.subr.bf16.mxu0 0
    %785 = vmatpush1.bf16.msra.mxu0 0
    %786 = vmatprep.subr.bf16.mxu0 0
    %787 = vmatpush1.bf16.msra.mxu0 0
    %788 = vmatprep.subr.bf16.mxu0 0
    %789 = vmatpush1.bf16.msra.mxu0 0
    %790 = vmatprep.subr.bf16.mxu0 0
    %791 = vmatpush1.bf16.msra.mxu0 0
    %792 = vmatprep.subr.bf16.mxu0 0
    %793 = vmatpush1.bf16.msra.mxu0 0
    %794 = vmatprep.subr.bf16.mxu0 0
    %795 = vmatpush1.bf16.msra.mxu0 0
    %796 = vmatprep.subr.bf16.mxu0 0
    %797 = vmatpush1.bf16.msra.mxu0 0
    %798 = vmatprep.subr.bf16.mxu0 0
    %799 = vmatpush1.bf16.msra.mxu0 0
    %800 = vmatprep.mubr.bf16.mxu0 0
    %801 = vmatmul.mubr.bf16.gmra.mrb[0].mxu0 %v659
    %v802 = vpop.f32.mrb[0].mxu0
    %v803 = vadd.f32 %v681, %v802
    %v804 = vpop.f32.mrb[0].mxu0
    %v805 = vadd.f32 %v685, %v804
    %v806 = vpop.f32.mrb[0].mxu0
    %v807 = vadd.f32 %v681, %v806
    %v808 = vpop.f32.mrb[0].mxu0
    %v809 = vadd.f32 %v685, %v808
    %810 = vdwg.mxu0
    %v811 = vmax.f32 %v803, 0.0
    %v812 = vmax.f32 %v805, 0.0
    %v813 = vmax.f32 %v807, 0.0
    %v814 = vmax.f32 %v809, 0.0
    %815 = vst [vmem:[#allocation11] sm:$0xff] %v811
    %816 = vst [vmem:[#allocation11 + $0x8] sm:$0xff] %v812
    %817 = vst [vmem:[#allocation11 + $0x10] sm:$0xff] %v813
    %818 = vst [vmem:[#allocation11 + $0x18] sm:$0xff] %v814
    // Predicated region
    $region74: #{tpu_custom_call.1} parent=1 // pred_check
      _
    $region75: #{tpu_custom_call.1} parent=1 // pred_check_branch
      %820 = sbr.rel (0) target = $region77
    $region76: #{tpu_custom_call.1} parent=1 // pred_region
      %s822 = ssub.s32 512, 512
      %823 = vsyncadd [#allocation4], %s822
      %s824 = sshll.u32 [#allocation11], 4
      %s825 = int_to_ptr.vmem [resolvable:$true] %s824
      %830 = dma.vmem_to_hbm [thread:$0]  %s825, 512, %s13, [#allocation4], 256, 256, 16
    $region77: #{tpu_custom_call.1} parent=1 // pred_fallthru
      _
    // Predicated region
    $region78: #{tpu_custom_call.1} parent=1 // pred_check
      _
    $region79: #{tpu_custom_call.1} parent=1 // pred_check_branch
      %832 = sbr.rel (0) target = $region81
    $region80: #{tpu_custom_call.1} parent=1 // pred_region
      %833 = dma.done [#allocation4], 512
    $region81: #{tpu_custom_call.1} parent=1 // pred_fallthru
      _
    %834 = vsyncpa [#allocation3], 1
    %835 = vsyncpa [#allocation6], 1
    %836 = vsyncpa [#allocation9], 1
    %837 = vsyncpa [#allocation4], 1

</llo_original>
